<compile_context>
chip_gen: v5e
topology: v5e:2x2
jax: 0.10.0
libtpu: 0.0.40
codegen_flags: <defaults>
</compile_context>

<pallas_src>
import functools

import jax
import jax.numpy as jnp
from jax.experimental import pallas as pl
from jax.experimental.pallas import tpu as pltpu


def _round_up(x, m):
    return ((x + m - 1) // m) * m


def _tpu_generation():
    """Best-effort TPU generation (4/5/6/7); conservative default 7."""
    try:
        kind = jax.devices()[0].device_kind.lower()
        for tag, gen in (("v7", 7), ("v6", 6), ("v5", 5), ("v4", 4)):
            if tag in kind:
                return gen
    except Exception:
        pass
    return 7


def _vmem_capacity_bytes():
    """Per-core VMEM capacity; falls back to generation defaults."""
    try:
        cap = getattr(pltpu.get_tpu_info(), "vmem_capacity_bytes", None)
        if cap:
            return int(cap)
    except Exception:
        pass
    return (64 if _tpu_generation() >= 7 else 128) * 1024 * 1024


def _lane_pad(d, gen):
    """Pad a lane (last) dim to a multiple of 128; prefer 256-multiples on
    v6e/v7x (2x256x256 MXU) when the dim is already wider than one 128 tile."""
    p = _round_up(d, 128)
    if gen >= 6 and p > 128:
        p = _round_up(d, 256)
    return p


def _pick_block_m(batch, d_in, h_p, d_out_p, x_itemsize, budget_bytes):
    """Pick the batch tile: largest multiple of 16 whose working set fits the
    VMEM budget, rebalanced to minimize batch padding and to keep >= 2 grid
    steps (so v7x can shard the parallel batch axis across both TensorCores).
    """
    b16 = _round_up(batch, 16)

    # Grid-invariant operands are still double-buffered by Pallas by default,
    # so count the bf16 weights and f32 biases twice.
    resident = 2 * (2 * (d_in * h_p + h_p * d_out_p) + 4 * (h_p + d_out_p))

    def per_step(tm):
        x_tile = 2 * tm * d_in * x_itemsize      # double-buffered x tile
        x_cast = tm * d_in * 2                   # in-kernel bf16 copy of x
        out_tile = 2 * tm * d_out_p * 2          # double-buffered bf16 output
        h_tile = tm * h_p * 4                    # f32 intermediate activations
        return x_tile + x_cast + out_tile + h_tile

    tm = 16
    for cand in (2048, 1024, 512, 256, 128, 64, 32, 16):
        if cand > b16:
            continue
        if resident + per_step(cand) <= budget_bytes:
            tm = cand
            break

    # Rebalance: keep the step count implied by tm, but shrink tm to the
    # smallest multiple of 16 that still covers the batch in that many steps
    # (minimizes batch-padding waste), and force >= 2 steps when possible.
    n_steps = pl.cdiv(b16, tm)
    if n_steps == 1 and b16 >= 32:
        n_steps = 2
    tm = _round_up(pl.cdiv(b16, n_steps), 16)
    b_pad = tm * n_steps
    return tm, b_pad


def _mlp_kernel(x_ref, w1_ref, b1_ref, w2_ref, b2_ref, o_ref):
    # x arrives in its native dtype; cast to bf16 in VMEM so x only ever costs
    # one HBM read per call (no wrapper cast pass).
    x = x_ref[...].astype(jnp.bfloat16)                       # (TM, D_in)
    h = jnp.dot(x, w1_ref[...], preferred_element_type=jnp.float32)
    h = jnp.maximum(h + b1_ref[...], 0.0)                     # f32 bias + ReLU
    y = jnp.dot(h.astype(jnp.bfloat16), w2_ref[...],
                preferred_element_type=jnp.float32)
    o_ref[...] = (y + b2_ref[...]).astype(o_ref.dtype)        # bf16 writeback


def prepare_mlp_params(w1, b1, w2, b2):
    """One-time padding + bf16 cast of the weights (hoisted out of the per-call
    path).  Zero padding is exact for this MLP: padded K columns contribute 0
    to the dots, padded b1 lanes give ReLU(0)=0, padded W2 rows are 0, and
    padded output lanes are sliced away."""
    gen = _tpu_generation()
    d_in, h_dim = w1.shape
    h_dim2, d_out = w2.shape
    assert h_dim == h_dim2
    h_p = _lane_pad(h_dim, gen)
    d_out_p = _lane_pad(d_out, gen)

    w1_p = jnp.zeros((d_in, h_p), jnp.bfloat16).at[:, :h_dim].set(
        w1.astype(jnp.bfloat16))
    b1_p = jnp.zeros((1, h_p), jnp.float32).at[:, :h_dim].set(
        jnp.reshape(b1, (1, -1)).astype(jnp.float32))
    w2_p = jnp.zeros((h_p, d_out_p), jnp.bfloat16).at[:h_dim, :d_out].set(
        w2.astype(jnp.bfloat16))
    b2_p = jnp.zeros((1, d_out_p), jnp.float32).at[:, :d_out].set(
        jnp.reshape(b2, (1, -1)).astype(jnp.float32))
    return w1_p, b1_p, w2_p, b2_p, d_out


@functools.partial(jax.jit, static_argnames=("d_out",))
def simple_mlp(x, w1_p, b1_p, w2_p, b2_p, *, d_out):
    """x: (B, D_in) any float dtype; padded params from prepare_mlp_params."""
    B, d_in = x.shape
    h_p = w1_p.shape[1]
    d_out_p = w2_p.shape[1]

    capacity = _vmem_capacity_bytes()
    budget = capacity // 2                   # ~64 MiB v5e/v6e, ~32 MiB v7x
    vmem_limit = (capacity * 3) // 4         # ~96 MiB v5e/v6e, ~48 MiB v7x

    tm, b_pad = _pick_block_m(B, d_in, h_p, d_out_p, x.dtype.itemsize, budget)
    grid = (b_pad // tm,)

    # Only x is touched per call; pad the batch only when needed (fuses under
    # jit into a single small copy).  D_in is deliberately NOT padded: the x
    # (and W1 K-dim) blocks use the full array extent and the MXU pads
    # internally, cutting the per-step input DMA for small D_in.
    x_in = x if b_pad == B else jnp.zeros((b_pad, d_in), x.dtype).at[:B].set(x)

    flops = 2 * b_pad * (d_in * h_p + h_p * d_out_p)
    bytes_accessed = (b_pad * d_in * x.dtype.itemsize        # x read
                      + 2 * (d_in * h_p + h_p * d_out_p)     # bf16 weights
                      + 4 * (h_p + d_out_p)                  # f32 biases
                      + 2 * b_pad * d_out_p)                 # bf16 output

    out_p = pl.pallas_call(
        _mlp_kernel,
        out_shape=jax.ShapeDtypeStruct((b_pad, d_out_p), jnp.bfloat16),
        grid=grid,
        in_specs=[
            # x: per-step batch tile, full (unpadded) D_in block.
            pl.BlockSpec((tm, d_in), lambda i: (i, 0)),
            # Grid-invariant, VMEM-resident weights/biases.
            pl.BlockSpec((d_in, h_p), lambda i: (0, 0)),
            pl.BlockSpec((1, h_p), lambda i: (0, 0)),
            pl.BlockSpec((h_p, d_out_p), lambda i: (0, 0)),
            pl.BlockSpec((1, d_out_p), lambda i: (0, 0)),
        ],
        out_specs=pl.BlockSpec((tm, d_out_p), lambda i: (i, 0)),
        compiler_params=pltpu.CompilerParams(
            dimension_semantics=("parallel",),
            vmem_limit_bytes=vmem_limit,
        ),
        cost_estimate=pl.CostEstimate(
            flops=flops, transcendentals=0, bytes_accessed=bytes_accessed),
    )(x_in, w1_p, b1_p, w2_p, b2_p)

    # Slice padding away; cast back to the caller dtype on the tiny result.
    return out_p[:B, :d_out].astype(x.dtype)


def mlp_reference(x, w1, b1, w2, b2):
    h = jnp.maximum(x @ w1 + b1, 0.0)
    return h @ w2 + b2


if __name__ == "__main__":
    # Small shapes consistent with the module: batch=8, input_dim=16,
    # hidden_dim=32, output_dim=8.
    B, D_in, H, D_out = 8, 16, 32, 8

    key = jax.random.PRNGKey(0)
    kx, kw1, kb1, kw2, kb2 = jax.random.split(key, 5)

    x = jax.random.normal(kx, (B, D_in), dtype=jnp.float32)
    # nn.Linear-style uniform(-1/sqrt(fan_in), 1/sqrt(fan_in)) init.
    w1 = jax.random.uniform(kw1, (D_in, H), jnp.float32, -1.0, 1.0) / jnp.sqrt(D_in)
    b1 = jax.random.uniform(kb1, (1, H), jnp.float32, -1.0, 1.0) / jnp.sqrt(D_in)
    w2 = jax.random.uniform(kw2, (H, D_out), jnp.float32, -1.0, 1.0) / jnp.sqrt(H)
    b2 = jax.random.uniform(kb2, (1, D_out), jnp.float32, -1.0, 1.0) / jnp.sqrt(H)

    # One-time parameter prep (pad + bf16 cast) hoisted out of the call path.
    w1_p, b1_p, w2_p, b2_p, d_out = prepare_mlp_params(w1, b1, w2, b2)

    out = simple_mlp(x, w1_p, b1_p, w2_p, b2_p, d_out=d_out)
    out = jax.block_until_ready(out)

    ref = mlp_reference(x, w1, b1, w2, b2)
    assert out.shape == (B, D_out)
    # bf16 MXU operands and bf16 writeback with f32 accumulation.
    assert jnp.allclose(out, ref, atol=5e-2, rtol=5e-2), (
        f"max abs err {jnp.max(jnp.abs(out - ref))}")

    print("KERNEL_OK")
</pallas_src>

<mosaic_0001>
module attributes {stable_mosaic.version = 11 : i64} {
  func.func @_mlp_kernel(%arg0: i32, %arg1: memref<16x16xf32, #tpu.memory_space<vmem>>, %arg2: memref<16x128xbf16, #tpu.memory_space<vmem>>, %arg3: memref<1x128xf32, #tpu.memory_space<vmem>>, %arg4: memref<128x128xbf16, #tpu.memory_space<vmem>>, %arg5: memref<1x128xf32, #tpu.memory_space<vmem>>, %arg6: memref<16x128xbf16, #tpu.memory_space<vmem>>) attributes {dimension_semantics = [#tpu.dimension_semantics<parallel>], iteration_bounds = array<i64: 1>, scalar_prefetch = 0 : i64, scratch_operands = 0 : i64, tpu.core_type = #tpu.core_type<tc>, window_params = [{transform_indices = @transform_0, window_bounds = array<i64: 16, 16>}, {pipeline_mode = #tpu.pipeline_mode<synchronous>, transform_indices = @transform_1, window_bounds = array<i64: 16, 128>}, {pipeline_mode = #tpu.pipeline_mode<synchronous>, transform_indices = @transform_2, window_bounds = array<i64: 1, 128>}, {pipeline_mode = #tpu.pipeline_mode<synchronous>, transform_indices = @transform_3, window_bounds = array<i64: 128, 128>}, {pipeline_mode = #tpu.pipeline_mode<synchronous>, transform_indices = @transform_4, window_bounds = array<i64: 1, 128>}, {transform_indices = @transform_5, window_bounds = array<i64: 16, 128>}]} {
    %c0 = arith.constant 0 : index
    %c0_0 = arith.constant 0 : index
    %0 = vector.load %arg1[%c0, %c0_0] : memref<16x16xf32, #tpu.memory_space<vmem>>, vector<16x16xf32>
    %1 = arith.truncf %0 : vector<16x16xf32> to vector<16x16xbf16>
    %c0_1 = arith.constant 0 : index
    %c0_2 = arith.constant 0 : index
    %2 = vector.load %arg2[%c0_1, %c0_2] : memref<16x128xbf16, #tpu.memory_space<vmem>>, vector<16x128xbf16>
    %cst = arith.constant dense<0.000000e+00> : vector<16x128xf32>
    %3 = tpu.matmul %1, %2, %cst {dimension_numbers = #tpu.dot_dimension_numbers<[1], [0], [0], [1], [0, 0, 1, 1], [], []>} : vector<16x16xbf16>, vector<16x128xbf16>, vector<16x128xf32> -> vector<16x128xf32>
    %c0_3 = arith.constant 0 : index
    %c0_4 = arith.constant 0 : index
    %4 = vector.load %arg3[%c0_3, %c0_4] : memref<1x128xf32, #tpu.memory_space<vmem>>, vector<1x128xf32>
    %5 = vector.broadcast %4 : vector<1x128xf32> to vector<16x128xf32>
    %6 = arith.addf %3, %5 : vector<16x128xf32>
    %cst_5 = arith.constant 0.000000e+00 : f32
    %7 = vector.broadcast %cst_5 : f32 to vector<16x128xf32>
    %8 = arith.maximumf %6, %7 : vector<16x128xf32>
    %9 = arith.truncf %8 : vector<16x128xf32> to vector<16x128xbf16>
    %c0_6 = arith.constant 0 : index
    %c0_7 = arith.constant 0 : index
    %10 = vector.load %arg4[%c0_6, %c0_7] : memref<128x128xbf16, #tpu.memory_space<vmem>>, vector<128x128xbf16>
    %cst_8 = arith.constant dense<0.000000e+00> : vector<16x128xf32>
    %11 = tpu.matmul %9, %10, %cst_8 {dimension_numbers = #tpu.dot_dimension_numbers<[1], [0], [0], [1], [0, 0, 1, 1], [], []>} : vector<16x128xbf16>, vector<128x128xbf16>, vector<16x128xf32> -> vector<16x128xf32>
    %c0_9 = arith.constant 0 : index
    %c0_10 = arith.constant 0 : index
    %12 = vector.load %arg5[%c0_9, %c0_10] : memref<1x128xf32, #tpu.memory_space<vmem>>, vector<1x128xf32>
    %13 = vector.broadcast %12 : vector<1x128xf32> to vector<16x128xf32>
    %14 = arith.addf %11, %13 : vector<16x128xf32>
    %15 = arith.truncf %14 : vector<16x128xf32> to vector<16x128xbf16>
    %c0_11 = arith.constant 0 : index
    %c0_12 = arith.constant 0 : index
    %16 = vector.load %arg6[%c0_11, %c0_12] : memref<16x128xbf16, #tpu.memory_space<vmem>>, vector<16x128xbf16>
    tpu.vector_store %arg6[%c0_11, %c0_12], %15 {strides = array<i32>} : memref<16x128xbf16, #tpu.memory_space<vmem>>, vector<16x128xbf16>,
    return
  }
  func.func @transform_0(%arg0: i32) -> (i32, i32) {
    %c0_i32 = arith.constant 0 : i32
    %c0_i32_0 = arith.constant 0 : i32
    return %arg0, %c0_i32 : i32, i32
  }
  func.func @transform_1(%arg0: i32) -> (i32, i32) {
    %c0_i32 = arith.constant 0 : i32
    %c0_i32_0 = arith.constant 0 : i32
    %c0_i32_1 = arith.constant 0 : i32
    return %c0_i32, %c0_i32_0 : i32, i32
  }
  func.func @transform_2(%arg0: i32) -> (i32, i32) {
    %c0_i32 = arith.constant 0 : i32
    %c0_i32_0 = arith.constant 0 : i32
    %c0_i32_1 = arith.constant 0 : i32
    return %c0_i32, %c0_i32_0 : i32, i32
  }
  func.func @transform_3(%arg0: i32) -> (i32, i32) {
    %c0_i32 = arith.constant 0 : i32
    %c0_i32_0 = arith.constant 0 : i32
    %c0_i32_1 = arith.constant 0 : i32
    return %c0_i32, %c0_i32_0 : i32, i32
  }
  func.func @transform_4(%arg0: i32) -> (i32, i32) {
    %c0_i32 = arith.constant 0 : i32
    %c0_i32_0 = arith.constant 0 : i32
    %c0_i32_1 = arith.constant 0 : i32
    return %c0_i32, %c0_i32_0 : i32, i32
  }
  func.func @transform_5(%arg0: i32) -> (i32, i32) {
    %c0_i32 = arith.constant 0 : i32
    %c0_i32_0 = arith.constant 0 : i32
    return %arg0, %c0_i32 : i32, i32
  }
}

</mosaic_0001>

<llo_original>
// kernel: simple_mlp.1
$region0: #{simple_mlp.1}
  #allocation0 [shape = 'u32[]', space=smem, size = 0x4, offset = 0x4, fixed_abs, tag = 'smem constant byte address 0x4 - core index']
  #allocation1 [shape = 'u32[72,128]{1,0:T(1,128)}', space=vmem, size = 0x9000, scoped, tag = 'internal scratch']
  %s0 = inlined_call_operand.vmem [shape: f32[16,16], index: 0, kind: input, shape index: {}]
  %s1 = inlined_call_operand.vmem [shape: bf16[16,128], index: 1, kind: input, shape index: {}]
  %s2 = inlined_call_operand.vmem [shape: f32[1,128], index: 2, kind: input, shape index: {}]
  %s3 = inlined_call_operand.hbm [shape: bf16[128,128], index: 3, kind: input, shape index: {}]
  %s4 = inlined_call_operand.vmem [shape: f32[1,128], index: 4, kind: input, shape index: {}]
  %s5 = inlined_call_operand.vmem [shape: bf16[16,128], index: 5, kind: output, shape index: {}]
  %s6 = sld [smem:[#allocation0]]
  $region34: #{simple_mlp.1} parent=0
    _
  %s8 = ssub.s32 1, %s6
  %s9 = scalar_select 0, %s8, %s6
  $region1: #{simple_mlp.1} parent=0
    #allocation2 [shape = 'u8[32768]{0}', space=vmem, size = 0x8000, scoped, tag = 'input window, operand 3, single buffered']
    #allocation3 [shape = 's32[1]{0}', space=sflag, size = 0x4, scoped, tag = 'scoped memory for simple_mlp.1']
    %10 = vsyncpa [#allocation3], 0
    // Predicated region
    $region2: #{simple_mlp.1} parent=1 // pred_check
      _
    $region3: #{simple_mlp.1} parent=1 // pred_check_branch
      %12 = sbr.rel (0) target = $region5
    $region4: #{simple_mlp.1} parent=1 // pred_region
      _
    $region5: #{simple_mlp.1} parent=1 // pred_fallthru
      _
    // Predicated region
    $region6: #{simple_mlp.1} parent=1 // pred_check
      _
    $region7: #{simple_mlp.1} parent=1 // pred_check_branch
      %14 = sbr.rel (0) target = $region9
    $region8: #{simple_mlp.1} parent=1 // pred_region
      _
    $region9: #{simple_mlp.1} parent=1 // pred_fallthru
      _
    // Predicated region
    $region10: #{simple_mlp.1} parent=1 // pred_check
      _
    $region11: #{simple_mlp.1} parent=1 // pred_check_branch
      %16 = sbr.rel (0) target = $region13
    $region12: #{simple_mlp.1} parent=1 // pred_region
      _
    $region13: #{simple_mlp.1} parent=1 // pred_fallthru
      _
    // Predicated region
    $region14: #{simple_mlp.1} parent=1 // pred_check
      _
    $region15: #{simple_mlp.1} parent=1 // pred_check_branch
      %18 = sbr.rel (0) target = $region17
    $region16: #{simple_mlp.1} parent=1 // pred_region
      %20 = vsyncadd [#allocation3], 0
      %s21 = sshll.u32 %s3, 4
      %s22 = int_to_ptr.hbm [resolvable:$true] %s21
      %s23 = sshll.u32 [#allocation2], 4
      %s24 = int_to_ptr.vmem [resolvable:$true] %s23
      %29 = dma.hbm_to_vmem [thread:$0]  %s22, 1024, %s24, [#allocation3], 64, 64, 4
    $region17: #{simple_mlp.1} parent=1 // pred_fallthru
      _
    // Predicated region
    $region18: #{simple_mlp.1} parent=1 // pred_check
      _
    $region19: #{simple_mlp.1} parent=1 // pred_check_branch
      %31 = sbr.rel (0) target = $region21
    $region20: #{simple_mlp.1} parent=1 // pred_region
      _
    $region21: #{simple_mlp.1} parent=1 // pred_fallthru
      _
    // Predicated region
    $region22: #{simple_mlp.1} parent=1 // pred_check
      _
    $region23: #{simple_mlp.1} parent=1 // pred_check_branch
      %33 = sbr.rel (0) target = $region25
    $region24: #{simple_mlp.1} parent=1 // pred_region
      %35 = dma.done [#allocation3], 1024
    $region25: #{simple_mlp.1} parent=1 // pred_fallthru
      _
    %v37 = vld [vmem:[%s0] sm:$0xff]
    %v38 = vld [vmem:[%s0 + $0x8] sm:$0xff]
    %v39 = vpack.c.bf16 %v38, %v37
    %v40 = vld [vmem:[%s1] sm:$0xf]
    %v41 = vld [vmem:[%s1 + $0x4] sm:$0xf]
    %v42 = vld [vmem:[%s2] sm:$0x1]
    %v44 = vperm.slane %v42, 0
    %v48 = vunpack.c.l.b16 %v40
    %v49 = vunpack.c.l.b16 %v41
    %v50 = vpack.c.b16 %v49, %v48
    %vm52 = vcmask 130048
    %v54 = vsel %vm52, %v39, 0
    %56 = vmatpush.bf16.msra.mxu0 0
    %57 = vmatpush.bf16.msra.mxu0 0
    %58 = vmatpush.bf16.msra.mxu0 0
    %59 = vmatpush.bf16.msra.mxu0 0
    %60 = vmatpush.bf16.msra.mxu0 0
    %61 = vmatpush.bf16.msra.mxu0 0
    %62 = vmatpush.bf16.msra.mxu0 0
    %63 = vmatpush.bf16.msra.mxu0 %v50
    %64 = vmatmul.bf16.gmra.mxu0 %v54
    %v65 = vpop.f32.mrf.mxu0
    %v66 = vadd.f32 %v44, %v65
    %v67 = vpop.f32.mrf.mxu0
    %v68 = vadd.f32 %v44, %v67
    %69 = vdwg.mxu0
    %v70 = vmax.f32 %v66, 0.0
    %v71 = vmax.f32 %v68, 0.0
    %v72 = vpack.c.bf16 %v71, %v70
    %v73 = vld [vmem:[#allocation2] sm:$0xf]
    %v74 = vld [vmem:[#allocation2 + $0x4] sm:$0xf]
    %v75 = vld [vmem:[#allocation2 + $0x8] sm:$0xf]
    %v76 = vld [vmem:[#allocation2 + $0xc] sm:$0xf]
    %v77 = vld [vmem:[#allocation2 + $0x10] sm:$0xf]
    %v78 = vld [vmem:[#allocation2 + $0x14] sm:$0xf]
    %v79 = vld [vmem:[#allocation2 + $0x18] sm:$0xf]
    %v80 = vld [vmem:[#allocation2 + $0x1c] sm:$0xf]
    %v81 = vld [vmem:[#allocation2 + $0x20] sm:$0xf]
    %v82 = vld [vmem:[#allocation2 + $0x24] sm:$0xf]
    %v83 = vld [vmem:[#allocation2 + $0x28] sm:$0xf]
    %v84 = vld [vmem:[#allocation2 + $0x2c] sm:$0xf]
    %v85 = vld [vmem:[#allocation2 + $0x30] sm:$0xf]
    %v86 = vld [vmem:[#allocation2 + $0x34] sm:$0xf]
    %v87 = vld [vmem:[#allocation2 + $0x38] sm:$0xf]
    %v88 = vld [vmem:[#allocation2 + $0x3c] sm:$0xf]
    %v89 = vld [vmem:[%s4] sm:$0x1]
    %v91 = vperm.slane %v89, 0
    %v109 = vunpack.c.l.b16 %v73
    %v110 = vunpack.c.l.b16 %v74
    %v111 = vunpack.c.l.b16 %v75
    %v112 = vunpack.c.l.b16 %v76
    %v113 = vunpack.c.l.b16 %v77
    %v114 = vunpack.c.l.b16 %v78
    %v115 = vunpack.c.l.b16 %v79
    %v116 = vunpack.c.l.b16 %v80
    %v117 = vunpack.c.l.b16 %v81
    %v118 = vunpack.c.l.b16 %v82
    %v119 = vunpack.c.l.b16 %v83
    %v120 = vunpack.c.l.b16 %v84
    %v121 = vunpack.c.l.b16 %v85
    %v122 = vunpack.c.l.b16 %v86
    %v123 = vunpack.c.l.b16 %v87
    %v124 = vunpack.c.l.b16 %v88
    %v125 = vpack.c.b16 %v110, %v109
    %v126 = vpack.c.b16 %v112, %v111
    %v127 = vpack.c.b16 %v114, %v113
    %v128 = vpack.c.b16 %v116, %v115
    %v129 = vpack.c.b16 %v118, %v117
    %v130 = vpack.c.b16 %v120, %v119
    %v131 = vpack.c.b16 %v122, %v121
    %v132 = vpack.c.b16 %v124, %v123
    %141 = vmatpush.bf16.msra.mxu0 %v132
    %142 = vmatpush.bf16.msra.mxu0 %v131
    %143 = vmatpush.bf16.msra.mxu0 %v130
    %144 = vmatpush.bf16.msra.mxu0 %v129
    %145 = vmatpush.bf16.msra.mxu0 %v128
    %146 = vmatpush.bf16.msra.mxu0 %v127
    %147 = vmatpush.bf16.msra.mxu0 %v126
    %148 = vmatpush.bf16.msra.mxu0 %v125
    %149 = vmatmul.bf16.gmra.mxu0 %v72
    %v150 = vpop.f32.mrf.mxu0
    %v151 = vadd.f32 %v91, %v150
    %v152 = vpop.f32.mrf.mxu0
    %v153 = vadd.f32 %v91, %v152
    %154 = vdwg.mxu0
    %v155 = vpack.c.bf16 %v151, %v151
    %v156 = vpack.c.bf16 %v153, %v153
    %157 = vst [vmem:[%s5] sm:$0xf] %v155
    %158 = vst [vmem:[%s5 + $0x4] sm:$0xf] %v156
    // Predicated region
    $region26: #{simple_mlp.1} parent=1 // pred_check
      _
    $region27: #{simple_mlp.1} parent=1 // pred_check_branch
      %160 = sbr.rel (0) target = $region29
    $region28: #{simple_mlp.1} parent=1 // pred_region
      _
    $region29: #{simple_mlp.1} parent=1 // pred_fallthru
      _
    // Predicated region
    $region30: #{simple_mlp.1} parent=1 // pred_check
      _
    $region31: #{simple_mlp.1} parent=1 // pred_check_branch
      %162 = sbr.rel (0) target = $region33
    $region32: #{simple_mlp.1} parent=1 // pred_region
      _
    $region33: #{simple_mlp.1} parent=1 // pred_fallthru
      _
    %163 = vsyncpa [#allocation3], 1

</llo_original>
